<compile_context>
chip_gen: v5e
topology: v5e:2x2
jax: 0.10.0
libtpu: 0.0.40
codegen_flags: <defaults>
</compile_context>

<pallas_src>
import functools

import jax
import jax.numpy as jnp
from jax.experimental import pallas as pl
from jax.experimental.pallas import tpu as pltpu


def _tpu_generation():
    """Best-effort TPU generation from device_kind ('TPU v6 lite' -> 6). Defaults to 6."""
    try:
        kind = jax.devices()[0].device_kind.lower()
    except Exception:
        return 6
    for g in (7, 6, 5, 4, 3, 2):
        if f"v{g}" in kind:
            return g
    return 6


def _vmem_limit_bytes(gen):
    if gen >= 7:
        return 48 * 1024 * 1024          # v7x: 64 MiB physical per core -> leave headroom
    if gen >= 4:
        return 64 * 1024 * 1024          # v4/v5e/v5p/v6e: 128 MiB physical
    return None                          # older chips: keep compiler default


def _softmax_exp_dtype(gen):
    # v6e/v7x EUP supports packed bf16 (~2x exp throughput); v5e and older do not.
    return jnp.bfloat16 if gen >= 6 else jnp.float32


def _pick_row_tile(n, gen):
    """Largest multiple of 32 <= cap dividing n (cap is generation-dependent)."""
    cap = 128 if gen >= 7 else 512
    if gen >= 7 and n >= 64:
        # Keep at least 2 "parallel" grid steps so both v7x TensorCores get work.
        cap = min(cap, max(32, (n // 2) // 32 * 32))
    start = (min(cap, n) // 32) * 32
    for t in range(start, 31, -32):
        if n % t == 0:
            return t
    return n  # single full block (always a legal BlockSpec)


def _gat_project_kernel(x_ref, waug_ref, h_ref, a_ref, *, hc):
    # One fused MXU matmul: [TM, F] @ [F, HC + 2H] (bf16 inputs, f32 accumulate).
    # Columns 0:HC are the projected features h; HC: are the per-head attention
    # logits (src then dst) since a = (x @ W) @ aproj = x @ (W @ aproj).
    xb = x_ref[...].astype(jnp.bfloat16)          # in-kernel cast: no extra HBM copy of x
    ha = jnp.dot(xb, waug_ref[...], preferred_element_type=jnp.float32)   # [TM, HC+2H]
    h_ref[...] = ha[:, :hc].astype(h_ref.dtype)   # h stored bf16 for the attention matmul
    a_ref[...] = ha[:, hc:]                       # [TM, 2H] f32 attention logits


def _gat_attn_kernel(adj_ref, adst_ref, asrcT_ref, h_ref, bias_ref, out_ref,
                     *, heads, out_channels, activation, exp_dtype):
    # Additive mask built once per tile (replaces H per-head selects).
    neg_bias = jnp.where(adj_ref[...] != 0, jnp.float32(0.0), jnp.float32(-1e30))  # [TM, N]
    a_dst = adst_ref[...]                # [TM, H]  (destination / target term)
    a_srcT = asrcT_ref[...]              # [H, N]   (pre-transposed once per layer)

    cols = []
    for head in range(heads):            # heads is small & static: unrolled
        c0 = head * out_channels
        e = a_dst[:, head:head + 1] + a_srcT[head:head + 1, :]        # [TM, N]
        e = jnp.where(e > 0, e, 0.2 * e)                              # LeakyReLU(0.2)
        e = e + neg_bias                                              # mask non-edges
        m = jnp.max(e, axis=1, keepdims=True)
        # Non-edges underflow to exactly 0 after the -1e30 sentinel + max-subtraction.
        # exp in bf16 on v6e/v7x (packed EUP); f32 accumulation for the denominator.
        p = jnp.exp((e - m).astype(exp_dtype))                        # [TM, N]
        s = jnp.sum(p.astype(jnp.float32), axis=1, keepdims=True)     # [TM, 1]
        acc = jnp.dot(p.astype(h_ref.dtype), h_ref[:, c0:c0 + out_channels],
                      preferred_element_type=jnp.float32)             # [TM, C]
        # Deferred softmax normalisation via the approx (EUP-slot) reciprocal.
        cols.append(acc * pl.reciprocal(s, approx=True))

    out = jnp.concatenate(cols, axis=1) + bias_ref[...]               # [TM, HC]
    if activation == "relu":
        out = jnp.maximum(out, 0.0)
    elif activation == "log_softmax":
        mx = jnp.max(out, axis=1, keepdims=True)
        z = out - mx
        out = z - jnp.log(jnp.sum(jnp.exp(z), axis=1, keepdims=True))
    # Single lane-dense full-width store (no per-head partial stores, no RMW).
    out_ref[...] = out


def gat_conv(x, adj_i8, w, att_src, att_dst, bias, *, heads, out_channels,
             activation, tile_m=None):
    """One GATConv layer. x:[N,F] f32, adj_i8:[N,N] int8, w:[F,H*C], att_*:[H,C], bias:[H*C]."""
    n, f = x.shape
    hc = heads * out_channels
    gen = _tpu_generation()
    tm = tile_m if tile_m is not None else _pick_row_tile(n, gen)
    assert n % tm == 0, f"N={n} must be divisible by row tile {tm}"
    grid = (n // tm,)

    # Fused block-diagonal attention projection folded into the weight matrix:
    #   w_aug = [W | W @ aproj], so one matmul yields h and the per-head logits
    #   (a[:, :H] = <h_head, att_src>, a[:, H:] = <h_head, att_dst>).
    aproj = jnp.zeros((hc, 2 * heads), jnp.float32)
    for hd in range(heads):
        aproj = aproj.at[hd * out_channels:(hd + 1) * out_channels, hd].set(att_src[hd])
        aproj = aproj.at[hd * out_channels:(hd + 1) * out_channels, heads + hd].set(att_dst[hd])
    w_aug = jnp.concatenate([w, w @ aproj], axis=1).astype(jnp.bfloat16)   # [F, HC+2H]
    bias2d = bias.reshape(1, hc).astype(jnp.float32)

    cparams = pltpu.CompilerParams(dimension_semantics=("parallel",),
                                   vmem_limit_bytes=_vmem_limit_bytes(gen))

    # --- kernel 1: fused projection (h and attention logits), tiled over node rows ---
    proj_kernel = functools.partial(_gat_project_kernel, hc=hc)
    h, a = pl.pallas_call(
        proj_kernel,
        out_shape=(jax.ShapeDtypeStruct((n, hc), jnp.bfloat16),
                   jax.ShapeDtypeStruct((n, 2 * heads), jnp.float32)),
        grid=grid,
        in_specs=[pl.BlockSpec((tm, f), lambda i: (i, 0)),                 # x rows (f32)
                  pl.BlockSpec((f, hc + 2 * heads), lambda i: (0, 0))],    # w_aug (full, bf16)
        out_specs=[pl.BlockSpec((tm, hc), lambda i: (i, 0)),               # h rows (bf16)
                   pl.BlockSpec((tm, 2 * heads), lambda i: (i, 0))],       # a rows (f32)
        compiler_params=cparams,
    )(x, w_aug)

    a_src_t = jnp.transpose(a[:, :heads])     # [H, N]; one transpose per layer (glue)
    a_dst = a[:, heads:]                      # [N, H]

    # --- kernel 2: masked attention softmax + aggregation, tiled over destination rows ---
    attn_kernel = functools.partial(_gat_attn_kernel, heads=heads,
                                    out_channels=out_channels, activation=activation,
                                    exp_dtype=_softmax_exp_dtype(gen))
    out = pl.pallas_call(
        attn_kernel,
        out_shape=jax.ShapeDtypeStruct((n, hc), jnp.float32),
        grid=grid,
        in_specs=[pl.BlockSpec((tm, n), lambda i: (i, 0)),            # adj rows (int8, pipelined)
                  pl.BlockSpec((tm, heads), lambda i: (i, 0)),        # a_dst rows
                  pl.BlockSpec((heads, n), lambda i: (0, 0)),         # a_src^T (full)
                  pl.BlockSpec((n, hc), lambda i: (0, 0)),            # h (full, bf16)
                  pl.BlockSpec((1, hc), lambda i: (0, 0))],           # bias
        out_specs=pl.BlockSpec((tm, hc), lambda i: (i, 0)),
        compiler_params=cparams,
    )(adj_i8, a_dst, a_src_t, h, bias2d)
    return out


# ------------------------- pure-JAX reference (f32) -------------------------

def gat_conv_ref(x, adj, w, att_src, att_dst, bias, *, heads, out_channels, activation):
    n = x.shape[0]
    h = x @ w                                             # [N, HC]
    hh = h.reshape(n, heads, out_channels)
    a_src = jnp.einsum("nhc,hc->nh", hh, att_src)
    a_dst = jnp.einsum("nhc,hc->nh", hh, att_dst)
    e = a_dst[:, None, :] + a_src[None, :, :]             # [N(dst), N(src), H]
    e = jnp.where(e > 0, e, 0.2 * e)
    mask = (adj > 0)[:, :, None]
    e = jnp.where(mask, e, -1e30)
    e = e - e.max(axis=1, keepdims=True)
    p = jnp.exp(e)
    p = jnp.where(mask, p, 0.0)
    alpha = p / p.sum(axis=1, keepdims=True)              # [N, N, H]
    out = jnp.einsum("ijh,jhc->ihc", alpha, hh).reshape(n, heads * out_channels) + bias
    if activation == "relu":
        out = jnp.maximum(out, 0.0)
    elif activation == "log_softmax":
        out = jax.nn.log_softmax(out, axis=1)
    return out


# ------------------------------ model wiring ------------------------------

def glorot(key, shape):
    fan_in, fan_out = shape[0], shape[-1]
    lim = (6.0 / (fan_in + fan_out)) ** 0.5
    return jax.random.uniform(key, shape, jnp.float32, -lim, lim)


def init_gat_params(key, features, hidden, classes, heads):
    ks = jax.random.split(key, 6)
    return {
        # gat1: GATConv(features, hidden, heads=heads), concat=True
        "w1": glorot(ks[0], (features, heads * hidden)),
        "att_src1": glorot(ks[1], (heads, hidden)),
        "att_dst1": glorot(ks[2], (heads, hidden)),
        "b1": jnp.zeros((heads * hidden,), jnp.float32),
        # gat2: GATConv(hidden*heads, classes), heads=1
        "w2": glorot(ks[3], (heads * hidden, classes)),
        "att_src2": glorot(ks[4], (1, classes)),
        "att_dst2": glorot(ks[5], (1, classes)),
        "b2": jnp.zeros((classes,), jnp.float32),
    }


def gat_forward(params, x, adj_i8, *, hidden, classes, heads, tile_m=None):
    # Layer 1 + ReLU (fused in kernel)
    h = gat_conv(x, adj_i8, params["w1"], params["att_src1"], params["att_dst1"],
                 params["b1"], heads=heads, out_channels=hidden,
                 activation="relu", tile_m=tile_m)
    # F.dropout(training=False) -> identity
    # Layer 2 + log_softmax(dim=1) (fused in kernel)
    return gat_conv(h, adj_i8, params["w2"], params["att_src2"], params["att_dst2"],
                    params["b2"], heads=1, out_channels=classes,
                    activation="log_softmax", tile_m=tile_m)


def gat_forward_ref(params, x, adj, *, hidden, classes, heads):
    h = gat_conv_ref(x, adj, params["w1"], params["att_src1"], params["att_dst1"],
                     params["b1"], heads=heads, out_channels=hidden, activation="relu")
    return gat_conv_ref(h, adj, params["w2"], params["att_src2"], params["att_dst2"],
                        params["b2"], heads=1, out_channels=classes,
                        activation="log_softmax")


def edge_index_to_adj(edge_index, n):
    """adj[dst, src] = 1 (int8) for each edge, plus self-loops (PyG add_self_loops=True)."""
    src, dst = edge_index[0], edge_index[1]
    adj = jnp.zeros((n, n), jnp.int8)
    adj = adj.at[dst, src].set(1)
    diag = jnp.arange(n)
    adj = adj.at[diag, diag].set(1)
    return adj


if __name__ == "__main__":
    N, FEATURES, HIDDEN, CLASSES, HEADS = 64, 16, 8, 4, 4
    TILE_M = 32   # -> grid=(2,): exercises the pipelined adjacency row tiles

    key = jax.random.PRNGKey(0)
    k_x, k_p, k_e = jax.random.split(key, 3)

    # Deterministic node features; bidirectional ring plus a few chords.
    x = jax.random.normal(k_x, (N, FEATURES), jnp.float32)
    src = jnp.arange(N)
    dst = (jnp.arange(N) + 1) % N
    chord_src = jax.random.randint(k_e, (N,), 0, N)
    chord_dst = (chord_src + N // 2) % N
    edge_index = jnp.stack([jnp.concatenate([src, dst, chord_src]),
                            jnp.concatenate([dst, src, chord_dst])])   # [2, 3N]
    adj = edge_index_to_adj(edge_index, N)

    params = init_gat_params(k_p, FEATURES, HIDDEN, CLASSES, HEADS)

    out = gat_forward(params, x, adj, hidden=HIDDEN, classes=CLASSES,
                      heads=HEADS, tile_m=TILE_M)
    out = jax.block_until_ready(out)

    assert out.shape == (N, CLASSES)
    assert bool(jnp.all(jnp.isfinite(out)))
    # log_softmax sanity: rows of exp(out) sum to ~1
    assert jnp.allclose(jnp.exp(out).sum(axis=1), 1.0, atol=1e-4)

    # Loose comparison against an f32 pure-JAX reference (kernel uses bf16 MXU inputs,
    # optional bf16 exp, and an approximate EUP reciprocal, so tolerance is generous).
    ref = gat_forward_ref(params, x, adj.astype(jnp.float32),
                          hidden=HIDDEN, classes=CLASSES, heads=HEADS)
    assert float(jnp.max(jnp.abs(out - ref))) < 0.25

    print("KERNEL_OK")
</pallas_src>

<mosaic_0001>
module attributes {stable_mosaic.version = 11 : i64} {
  func.func @_gat_project_kernel(%arg0: i32, %arg1: memref<32x16xf32, #tpu.memory_space<vmem>>, %arg2: memref<16x40xbf16, #tpu.memory_space<vmem>>, %arg3: memref<32x32xbf16, #tpu.memory_space<vmem>>, %arg4: memref<32x8xf32, #tpu.memory_space<vmem>>) attributes {dimension_semantics = [#tpu.dimension_semantics<parallel>], iteration_bounds = array<i64: 2>, scalar_prefetch = 0 : i64, scratch_operands = 0 : i64, tpu.core_type = #tpu.core_type<tc>, window_params = [{transform_indices = @transform_0, window_bounds = array<i64: 32, 16>}, {pipeline_mode = #tpu.pipeline_mode<synchronous>, transform_indices = @transform_1, window_bounds = array<i64: 16, 40>}, {transform_indices = @transform_2, window_bounds = array<i64: 32, 32>}, {transform_indices = @transform_3, window_bounds = array<i64: 32, 8>}]} {
    %c0 = arith.constant 0 : index
    %c0_0 = arith.constant 0 : index
    %0 = vector.load %arg1[%c0, %c0_0] : memref<32x16xf32, #tpu.memory_space<vmem>>, vector<32x16xf32>
    %1 = arith.truncf %0 : vector<32x16xf32> to vector<32x16xbf16>
    %c0_1 = arith.constant 0 : index
    %c0_2 = arith.constant 0 : index
    %2 = vector.load %arg2[%c0_1, %c0_2] : memref<16x40xbf16, #tpu.memory_space<vmem>>, vector<16x40xbf16>
    %cst = arith.constant dense<0.000000e+00> : vector<32x40xf32>
    %3 = tpu.matmul %1, %2, %cst {dimension_numbers = #tpu.dot_dimension_numbers<[1], [0], [0], [1], [0, 0, 1, 1], [], []>} : vector<32x16xbf16>, vector<16x40xbf16>, vector<32x40xf32> -> vector<32x40xf32>
    %4 = vector.extract_strided_slice %3 {offsets = [0, 0], sizes = [32, 32], strides = [1, 1]} : vector<32x40xf32> to vector<32x32xf32>
    %5 = arith.truncf %4 : vector<32x32xf32> to vector<32x32xbf16>
    %c0_3 = arith.constant 0 : index
    %c0_4 = arith.constant 0 : index
    %6 = vector.load %arg3[%c0_3, %c0_4] : memref<32x32xbf16, #tpu.memory_space<vmem>>, vector<32x32xbf16>
    tpu.vector_store %arg3[%c0_3, %c0_4], %5 {strides = array<i32>} : memref<32x32xbf16, #tpu.memory_space<vmem>>, vector<32x32xbf16>,
    %7 = vector.extract_strided_slice %3 {offsets = [0, 32], sizes = [32, 8], strides = [1, 1]} : vector<32x40xf32> to vector<32x8xf32>
    %c0_5 = arith.constant 0 : index
    %c0_6 = arith.constant 0 : index
    %8 = vector.load %arg4[%c0_5, %c0_6] : memref<32x8xf32, #tpu.memory_space<vmem>>, vector<32x8xf32>
    tpu.vector_store %arg4[%c0_5, %c0_6], %7 {strides = array<i32>} : memref<32x8xf32, #tpu.memory_space<vmem>>, vector<32x8xf32>,
    return
  }
  func.func @transform_0(%arg0: i32) -> (i32, i32) {
    %c0_i32 = arith.constant 0 : i32
    %c0_i32_0 = arith.constant 0 : i32
    return %arg0, %c0_i32 : i32, i32
  }
  func.func @transform_1(%arg0: i32) -> (i32, i32) {
    %c0_i32 = arith.constant 0 : i32
    %c0_i32_0 = arith.constant 0 : i32
    %c0_i32_1 = arith.constant 0 : i32
    return %c0_i32, %c0_i32_0 : i32, i32
  }
  func.func @transform_2(%arg0: i32) -> (i32, i32) {
    %c0_i32 = arith.constant 0 : i32
    %c0_i32_0 = arith.constant 0 : i32
    return %arg0, %c0_i32 : i32, i32
  }
  func.func @transform_3(%arg0: i32) -> (i32, i32) {
    %c0_i32 = arith.constant 0 : i32
    %c0_i32_0 = arith.constant 0 : i32
    return %arg0, %c0_i32 : i32, i32
  }
}

</mosaic_0001>

<llo_original>
// kernel: tpu_custom_call.1
$region0: #{tpu_custom_call.1}
  #allocation0 [shape = 'u32[]', space=smem, size = 0x4, offset = 0x4, fixed_abs, tag = 'smem constant byte address 0x4 - core index']
  #allocation1 [shape = 'u32[72,128]{1,0:T(1,128)}', space=vmem, size = 0x9000, scoped, tag = 'internal scratch']
  %s0 = inlined_call_operand.vmem [shape: f32[64,16], index: 0, kind: input, shape index: {}]
  %s1 = inlined_call_operand.vmem [shape: bf16[16,40], index: 1, kind: input, shape index: {}]
  %s2 = inlined_call_operand.vmem [shape: bf16[64,32], index: 2, kind: output, shape index: {0}]
  %s3 = inlined_call_operand.vmem [shape: f32[64,8], index: 3, kind: output, shape index: {1}]
  %4 = xla_tuple %s2, %s3
  %s5 = sld [smem:[#allocation0]]
  $region49: #{tpu_custom_call.1} parent=0
    _
  %s7 = ssub.s32 1, %s5
  %s8 = scalar_select 0, %s7, %s5
  loop: start=0, step=1, limit=4
  $region2: #{tpu_custom_call.1} parent=0 // loop_pre_header
    _
  $region3: #{tpu_custom_call.1} parent=0 // loop_header
    %s10 = sphi 0, %s14
    %p11 = scmp.ge.s32.totalorder %s10, 4
    %s20 = sphi 0, %s22
    %s23 = sphi 0, %s20
    %s24 = sphi 0, %s23
    %s40 = sphi 0, %s24
    %s44 = sphi 0, %s44
    %s46 = sphi 0, %s44
    %s47 = sphi 0, %s46
    %s61 = sphi 0, %s47
    %s67 = sphi 0, %s69
    %s70 = sphi 0, %s67
    %s71 = sphi 0, %s70
    %s87 = sphi 0, %s71
    %s93 = sphi 0, %s95
    %s96 = sphi 0, %s93
    %s97 = sphi 0, %s96
    %s113 = sphi 0, %s97
  $region4: #{tpu_custom_call.1} parent=0 // loop_header_branch
    %13 = sbr.rel (%p11) target = $region8
  $region5: #{tpu_custom_call.1} parent=0 // loop_body
    %s15 = ssub.s32 %s10, 1
    %s16 = ssub.s32 %s10, 2
    %s17 = sadd.s32 %s10, 1
    %s18 = ssub.s32 %s10, %s17
    %p19 = scmp.eq.s32.totalorder %s18, 0
    %s21 = sadd.s32 %s20, 1
    %s22 = scalar_select %p19, %s20, %s21
    %p25 = pneg %p19
    %p26 = scmp.eq.s32.totalorder %s10, 1
    %p27 = por %p25, %p26
    %p28 = scmp.ne.s32.totalorder %s20, %s23
    %p29 = scmp.eq.s32.totalorder %s10, 0
    %p30 = por %p28, %p29
    %p31 = scmp.ne.s32.totalorder %s20, %s23
    %p32 = scmp.eq.s32.totalorder %s15, 1
    %p33 = por %p31, %p32
    %p34 = scmp.ne.s32.totalorder %s23, %s24
    %p35 = scmp.eq.s32.totalorder %s15, 0
    %p36 = por %p34, %p35
    %p37 = scmp.ne.s32.totalorder %s23, %s24
    %p38 = scmp.eq.s32.totalorder %s16, 1
    %p39 = por %p37, %p38
    %p41 = scmp.ne.s32.totalorder %s24, %s40
    %p42 = scmp.eq.s32.totalorder %s16, 0
    %p43 = por %p41, %p42
    %s45 = sadd.s32 %s44, 1
    %p48 = scmp.eq.s32.totalorder %s10, 1
    %p49 = scmp.ne.s32.totalorder %s44, %s46
    %p50 = scmp.eq.s32.totalorder %s10, 0
    %p51 = por %p49, %p50
    %p52 = scmp.ne.s32.totalorder %s44, %s46
    %p53 = scmp.eq.s32.totalorder %s15, 1
    %p54 = por %p52, %p53
    %p55 = scmp.ne.s32.totalorder %s46, %s47
    %p56 = scmp.eq.s32.totalorder %s15, 0
    %p57 = por %p55, %p56
    %p58 = scmp.ne.s32.totalorder %s46, %s47
    %p59 = scmp.eq.s32.totalorder %s16, 1
    %p60 = por %p58, %p59
    %p62 = scmp.ne.s32.totalorder %s47, %s61
    %p63 = scmp.eq.s32.totalorder %s16, 0
    %p64 = por %p62, %p63
    %s65 = ssub.s32 %s10, %s17
    %p66 = scmp.eq.s32.totalorder %s65, 0
    %s68 = sadd.s32 %s67, 1
    %s69 = scalar_select %p66, %s67, %s68
    %p72 = pneg %p66
    %p73 = scmp.eq.s32.totalorder %s10, 1
    %p74 = por %p72, %p73
    %p75 = scmp.ne.s32.totalorder %s67, %s70
    %p76 = scmp.eq.s32.totalorder %s10, 0
    %p77 = por %p75, %p76
    %p78 = scmp.ne.s32.totalorder %s67, %s70
    %p79 = scmp.eq.s32.totalorder %s15, 1
    %p80 = por %p78, %p79
    %p81 = scmp.ne.s32.totalorder %s70, %s71
    %p82 = scmp.eq.s32.totalorder %s15, 0
    %p83 = por %p81, %p82
    %p84 = scmp.ne.s32.totalorder %s70, %s71
    %p85 = scmp.eq.s32.totalorder %s16, 1
    %p86 = por %p84, %p85
    %p88 = scmp.ne.s32.totalorder %s71, %s87
    %p89 = scmp.eq.s32.totalorder %s16, 0
    %p90 = por %p88, %p89
    %s91 = ssub.s32 %s10, %s17
    %p92 = scmp.eq.s32.totalorder %s91, 0
    %s94 = sadd.s32 %s93, 1
    %s95 = scalar_select %p92, %s93, %s94
    %p98 = pneg %p92
    %p99 = scmp.eq.s32.totalorder %s10, 1
    %p100 = por %p98, %p99
    %p101 = scmp.ne.s32.totalorder %s93, %s96
    %p102 = scmp.eq.s32.totalorder %s10, 0
    %p103 = por %p101, %p102
    %p104 = scmp.ne.s32.totalorder %s93, %s96
    %p105 = scmp.eq.s32.totalorder %s15, 1
    %p106 = por %p104, %p105
    %p107 = scmp.ne.s32.totalorder %s96, %s97
    %p108 = scmp.eq.s32.totalorder %s15, 0
    %p109 = por %p107, %p108
    %p110 = scmp.ne.s32.totalorder %s96, %s97
    %p111 = scmp.eq.s32.totalorder %s16, 1
    %p112 = por %p110, %p111
    %p114 = scmp.ne.s32.totalorder %s97, %s113
    %p115 = scmp.eq.s32.totalorder %s16, 0
    %p116 = por %p114, %p115
    %p117 = scmp.le.s32.totalorder 1, %s10
    %p118 = scmp.lt.s32.totalorder %s10, 3
    %p119 = pnand %p117, %p118
    %p120 = pneg %p119
    // Predicated region
    $region9: #{tpu_custom_call.1} parent=5 // pred_check
      _
    $region10: #{tpu_custom_call.1} parent=5 // pred_check_branch
      %122 = sbr.rel (%p119) target = $region12
    $region11: #{tpu_custom_call.1} parent=5 // pred_region
      %s123 = ssub.s32 %s10, 1
      // Predicated region
      $region13: #{tpu_custom_call.1} parent=11 // pred_check
        %p124 = pneg %p57
      $region14: #{tpu_custom_call.1} parent=11 // pred_check_branch
        %126 = sbr.rel (%p124) target = $region16
      $region15: #{tpu_custom_call.1} parent=11 // pred_region
        _
      $region16: #{tpu_custom_call.1} parent=11 // pred_fallthru
        _
    $region12: #{tpu_custom_call.1} parent=5 // pred_fallthru
      _
    %p127 = scmp.lt.s32.totalorder %s10, 2
    // Predicated region
    $region17: #{tpu_custom_call.1} parent=5 // pred_check
      %p128 = pneg %p127
    $region18: #{tpu_custom_call.1} parent=5 // pred_check_branch
      %130 = sbr.rel (%p128) target = $region20
    $region19: #{tpu_custom_call.1} parent=5 // pred_region
      // Predicated region
      $region21: #{tpu_custom_call.1} parent=19 // pred_check
        %p131 = pneg %p30
      $region22: #{tpu_custom_call.1} parent=19 // pred_check_branch
        %133 = sbr.rel (%p131) target = $region24
      $region23: #{tpu_custom_call.1} parent=19 // pred_region
        %s134 = smul.u32 4, %s10
        %p135 = scmp.lt.s32.totalorder %s134, 7
        %s136 = scalar_select %p135, %s134, 7
        %s137 = smul.addr %s136, 8
        %s138 = scalar_lea.vmem %s0, %s137
        %s139 = smul.u32 4, %s10
      $region24: #{tpu_custom_call.1} parent=19 // pred_fallthru
        _
    $region20: #{tpu_custom_call.1} parent=5 // pred_fallthru
      _
    %p140 = scmp.le.s32.totalorder 1, %s10
    %p141 = scmp.lt.s32.totalorder %s10, 3
    %p142 = pnand %p140, %p141
    %p143 = pneg %p142
    // Predicated region
    $region25: #{tpu_custom_call.1} parent=5 // pred_check
      _
    $region26: #{tpu_custom_call.1} parent=5 // pred_check_branch
      %145 = sbr.rel (%p142) target = $region28
    $region27: #{tpu_custom_call.1} parent=5 // pred_region
      %s146 = ssub.s32 %s10, 1
      %s147 = smul.u32 4, %s15
      %p148 = scmp.lt.s32.totalorder %s147, 7
      %s149 = scalar_select %p148, %s147, 7
      %s150 = smul.addr %s149, 8
      %s151 = scalar_lea.vmem %s0, %s150
      %p152 = pneg %p36
      %p153 = pneg %p33
      %p154 = pneg %p57
      %p155 = pneg %p54
      %p156 = pneg %p83
      %p157 = pneg %p80
      %s158 = smul.u32 4, %s15
      %p159 = scmp.lt.s32.totalorder %s158, 7
      %s160 = scalar_select %p159, %s158, 7
      %s161 = smul.addr %s160, 4
      %s162 = scalar_lea.vmem %s2, %s161
      %p163 = pneg %p109
      %p164 = pneg %p106
      %s165 = smul.u32 4, %s15
      %p166 = scmp.lt.s32.totalorder %s165, 7
      %s167 = scalar_select %p166, %s165, 7
      %s168 = smul.addr %s167, 8
      %s169 = scalar_lea.vmem %s3, %s168
      %s170 = smul.u32 4, %s15
      %p171 = scmp.lt.s32.totalorder %s170, 7
      %s172 = scalar_select %p171, %s170, 7
      %s173 = smul.addr %s172, 8
      %s174 = scalar_lea.vmem %s0, %s173
      %s175 = smul.u32 4, %s15
      %s176 = smul.u32 4, %s15
      %p177 = scmp.lt.s32.totalorder %s176, 7
      %s178 = scalar_select %p177, %s176, 7
      %s179 = smul.addr %s178, 4
      %s180 = scalar_lea.vmem %s2, %s179
      %s181 = smul.u32 4, %s15
      %s182 = smul.u32 4, %s15
      %p183 = scmp.lt.s32.totalorder %s182, 7
      %s184 = scalar_select %p183, %s182, 7
      %s185 = smul.addr %s184, 8
      %s186 = scalar_lea.vmem %s3, %s185
      %s187 = smul.u32 4, %s15
      %v189 = vld [vmem:[%s174] sm:$0xff]
      %v190 = vld [vmem:[%s174 + $0x8] sm:$0xff]
      %v191 = vld [vmem:[%s174 + $0x10] sm:$0xff]
      %v192 = vld [vmem:[%s174 + $0x18] sm:$0xff]
      %v193 = vpack.c.bf16 %v190, %v189
      %v194 = vpack.c.bf16 %v192, %v191
      %v195 = vld [vmem:[%s1] sm:$0xf]
      %v196 = vld [vmem:[%s1 + $0x4] sm:$0xf]
      %v199 = vunpack.c.l.b16 %v195
      %v200 = vunpack.c.l.b16 %v196
      %v201 = vpack.c.b16 %v200, %v199
      %vm203 = vcmask 130048
      %v205 = vsel %vm203, %v193, 0
      %v208 = vsel %vm203, %v194, 0
      %210 = vmatpush.bf16.msra.mxu0 0
      %211 = vmatpush.bf16.msra.mxu0 0
      %212 = vmatpush.bf16.msra.mxu0 0
      %213 = vmatpush.bf16.msra.mxu0 0
      %214 = vmatpush.bf16.msra.mxu0 0
      %215 = vmatpush.bf16.msra.mxu0 0
      %216 = vmatpush.bf16.msra.mxu0 0
      %217 = vmatpush.bf16.msra.mxu0 %v201
      %218 = vmatmul.bf16.gmra.mxu0 %v205
      %v219 = vpop.f32.mrf.mxu0
      %v220 = vadd.f32 0.0, %v219
      %v221 = vpop.f32.mrf.mxu0
      %v222 = vadd.f32 0.0, %v221
      %223 = vmatmul.bf16.gmra.mxu0 %v208
      %v224 = vpop.f32.mrf.mxu0
      %v225 = vadd.f32 0.0, %v224
      %v226 = vpop.f32.mrf.mxu0
      %v227 = vadd.f32 0.0, %v226
      %228 = vdwg.mxu0
      %v229 = vpack.c.bf16 %v220, %v220
      %v230 = vpack.c.bf16 %v222, %v222
      %v231 = vpack.c.bf16 %v225, %v225
      %v232 = vpack.c.bf16 %v227, %v227
      %vm233 = vcmask 257024
      %234 = vst.msk [vmem:[%s180] sm:$0xf] %vm233, %v229
      %235 = vst.msk [vmem:[%s180 + $0x4] sm:$0xf] %vm233, %v230
      %236 = vst.msk [vmem:[%s180 + $0x8] sm:$0xf] %vm233, %v231
      %237 = vst.msk [vmem:[%s180 + $0xc] sm:$0xf] %vm233, %v232
      %242 = vrot.lane.b32.xlu0 %v220, 96
      %v243 = vpop.permute.xlu0 %242
      %244 = vrot.lane.b32.xlu0 %v222, 96
      %v245 = vpop.permute.xlu0 %244
      %246 = vrot.lane.b32.xlu0 %v225, 96
      %v247 = vpop.permute.xlu0 %246
      %248 = vrot.lane.b32.xlu0 %v227, 96
      %v249 = vpop.permute.xlu0 %248
      %vm254 = vcmask 64512
      %255 = vst.msk [vmem:[%s186] sm:$0xff] %vm254, %v243
      %256 = vst.msk [vmem:[%s186 + $0x8] sm:$0xff] %vm254, %v245
      %257 = vst.msk [vmem:[%s186 + $0x10] sm:$0xff] %vm254, %v247
      %258 = vst.msk [vmem:[%s186 + $0x18] sm:$0xff] %vm254, %v249
      %s259 = smul.u32 4, %s15
      %p260 = scmp.lt.s32.totalorder %s259, 7
      %s261 = scalar_select %p260, %s259, 7
      %s262 = smul.addr %s261, 4
      %s263 = scalar_lea.vmem %s2, %s262
      %s264 = smul.u32 4, %s15
      %p265 = scmp.lt.s32.totalorder %s264, 7
      %s266 = scalar_select %p265, %s264, 7
      %s267 = smul.addr %s266, 8
      %s268 = scalar_lea.vmem %s3, %s267
      // Predicated region
      $region29: #{tpu_custom_call.1} parent=27 // pred_check
        %p269 = pneg %p80
      $region30: #{tpu_custom_call.1} parent=27 // pred_check_branch
        %271 = sbr.rel (%p269) target = $region32
      $region31: #{tpu_custom_call.1} parent=27 // pred_region
        %s272 = smul.u32 4, %s15
      $region32: #{tpu_custom_call.1} parent=27 // pred_fallthru
        _
      // Predicated region
      $region33: #{tpu_custom_call.1} parent=27 // pred_check
        %p273 = pneg %p106
      $region34: #{tpu_custom_call.1} parent=27 // pred_check_branch
        %275 = sbr.rel (%p273) target = $region36
      $region35: #{tpu_custom_call.1} parent=27 // pred_region
        %s276 = smul.u32 4, %s15
      $region36: #{tpu_custom_call.1} parent=27 // pred_fallthru
        _
    $region28: #{tpu_custom_call.1} parent=5 // pred_fallthru
      _
    %p277 = scmp.le.s32.totalorder 2, %s10
    // Predicated region
    $region37: #{tpu_custom_call.1} parent=5 // pred_check
      %p278 = pneg %p277
    $region38: #{tpu_custom_call.1} parent=5 // pred_check_branch
      %280 = sbr.rel (%p278) target = $region40
    $region39: #{tpu_custom_call.1} parent=5 // pred_region
      %s281 = ssub.s32 %s10, 2
      // Predicated region
      $region41: #{tpu_custom_call.1} parent=39 // pred_check
        %p282 = pneg %p86
      $region42: #{tpu_custom_call.1} parent=39 // pred_check_branch
        %284 = sbr.rel (%p282) target = $region44
      $region43: #{tpu_custom_call.1} parent=39 // pred_region
        %s285 = smul.u32 4, %s16
        %p286 = scmp.lt.s32.totalorder %s285, 7
        %s287 = scalar_select %p286, %s285, 7
        %s288 = smul.addr %s287, 4
        %s289 = scalar_lea.vmem %s2, %s288
      $region44: #{tpu_custom_call.1} parent=39 // pred_fallthru
        _
      // Predicated region
      $region45: #{tpu_custom_call.1} parent=39 // pred_check
        %p290 = pneg %p112
      $region46: #{tpu_custom_call.1} parent=39 // pred_check_branch
        %292 = sbr.rel (%p290) target = $region48
      $region47: #{tpu_custom_call.1} parent=39 // pred_region
        %s293 = smul.u32 4, %s16
        %p294 = scmp.lt.s32.totalorder %s293, 7
        %s295 = scalar_select %p294, %s293, 7
        %s296 = smul.addr %s295, 8
        %s297 = scalar_lea.vmem %s3, %s296
      $region48: #{tpu_custom_call.1} parent=39 // pred_fallthru
        _
    $region40: #{tpu_custom_call.1} parent=5 // pred_fallthru
      _
  $region6: #{tpu_custom_call.1} parent=0 // loop_footer
    %s14 = sadd.s32 1, %s10
  $region7: #{tpu_custom_call.1} parent=0 // loop_footer_branch
    %9 = sbr.rel target = $region3
  $region8: #{tpu_custom_call.1} parent=0 // loop_exit
    _

</llo_original>
